<compile_context>
chip_gen: v7x
topology: tpu7x:2x2x1
jax: 0.10.0
libtpu: 0.0.40
codegen_flags: <defaults>
</compile_context>

<pallas_src>
from functools import partial

import jax
import jax.numpy as jnp
from jax.experimental import pallas as pl
from jax.experimental.pallas import tpu as pltpu

LANE = 128          # vreg lane width
BF16_SUBLANE = 16   # bf16 rows per packed sublane group
MAX_TILE_B = 1024   # upper bound on batch tile rows
OUT_DTYPE = jnp.float32  # keep final Q-values f32 (see correctness note above)


def _round_up(x, m):
    return (x + m - 1) // m * m


def qnet_kernel(x_ref, w1_ref, b1_ref, w2_ref, b2_ref, w3_ref, b3_ref, o_ref):
    # x / weights are bf16 (MXU-native); accumulate in f32; biases stay f32.
    x = x_ref[...]                                                   # (tile_b, dim_state)
    h1 = jnp.dot(x, w1_ref[...], preferred_element_type=jnp.float32) + b1_ref[...]
    h1 = jnp.maximum(h1, 0.0).astype(jnp.bfloat16)
    h2 = jnp.dot(h1, w2_ref[...], preferred_element_type=jnp.float32) + b2_ref[...]
    h2 = jnp.maximum(h2, 0.0).astype(jnp.bfloat16)
    o_ref[...] = (
        jnp.dot(h2, w3_ref[...], preferred_element_type=jnp.float32) + b3_ref[...]
    ).astype(o_ref.dtype)


def init_qnet_params(key, dim_state, n_hidden, n_action):
    """torch.nn.Linear-style init (uniform +/- 1/sqrt(fan_in)), weights stored [in, out]."""
    keys = jax.random.split(key, 6)

    def linear(kw, kb, fan_in, fan_out):
        bound = 1.0 / jnp.sqrt(jnp.float32(fan_in))
        w = jax.random.uniform(kw, (fan_in, fan_out), jnp.float32, -bound, bound)
        b = jax.random.uniform(kb, (1, fan_out), jnp.float32, -bound, bound)
        return w, b

    w1, b1 = linear(keys[0], keys[1], dim_state, n_hidden)
    w2, b2 = linear(keys[2], keys[3], n_hidden, n_hidden)
    w3, b3 = linear(keys[4], keys[5], n_hidden, n_action)
    return {"w1": w1, "b1": b1, "w2": w2, "b2": b2, "w3": w3, "b3": b3}


def prepare_params(params):
    """One-time prep: pad hidden/action dims to 128 lanes and cast weights to bf16.
    w1 keeps its REAL dim_state row count (no K padding). Padded cols / bias entries
    are zero, so results are unchanged."""
    ds, nh = params["w1"].shape
    na = params["w3"].shape[1]
    h_p, a_p = _round_up(nh, LANE), _round_up(na, LANE)

    def pad_w(w, rows, cols):
        out = jnp.zeros((rows, cols), jnp.bfloat16)
        return out.at[: w.shape[0], : w.shape[1]].set(w.astype(jnp.bfloat16))

    def pad_b(b, cols):
        out = jnp.zeros((1, cols), jnp.float32)
        return out.at[:, : b.shape[1]].set(b.astype(jnp.float32))

    return {
        "w1": pad_w(params["w1"], ds, h_p),  "b1": pad_b(params["b1"], h_p),
        "w2": pad_w(params["w2"], h_p, h_p), "b2": pad_b(params["b2"], h_p),
        "w3": pad_w(params["w3"], h_p, a_p), "b3": pad_b(params["b3"], a_p),
    }


def _batch_tiling(B):
    """Choose (B_pad, tile_b).
    Small batches: one full block, 16-row aligned (bf16 sublane packing).
    Large batches: tiles up to MAX_TILE_B rows, but always >= 2 grid steps so v7x's
    second TensorCore has work (no-op on v5e/v6e)."""
    if B <= LANE:
        B_pad = _round_up(B, BF16_SUBLANE)
        return B_pad, B_pad
    B_pad = _round_up(B, LANE)
    tile_b = min(MAX_TILE_B, _round_up(B_pad // 2, LANE))
    B_pad = _round_up(B_pad, tile_b)
    return B_pad, tile_b


@partial(jax.jit, static_argnames=("n_action",))
def qnet_forward(x, kp, n_action):
    """x: [batch, dim_state] f32.  kp: padded/bf16 params from prepare_params."""
    B, ds = x.shape
    a_p = kp["w3"].shape[1]

    B_pad, tile_b = _batch_tiling(B)
    grid = (B_pad // tile_b,)

    # Only the batch dim is (cheaply) padded; feature dim stays at its real width.
    x_bf16 = x.astype(jnp.bfloat16)
    if B_pad != B:
        x_bf16 = jnp.pad(x_bf16, ((0, B_pad - B), (0, 0)))

    # Weights/biases: full-array blocks with constant index_maps -> DMA'd once,
    # VMEM-resident for every batch tile.
    const = lambda shape: pl.BlockSpec(shape, lambda i: (0, 0))

    out = pl.pallas_call(
        qnet_kernel,
        out_shape=jax.ShapeDtypeStruct((B_pad, a_p), OUT_DTYPE),
        grid=grid,
        in_specs=[
            # last dim == full array dim (real dim_state), so no 128-lane padding needed
            pl.BlockSpec((tile_b, ds), lambda i: (i, 0)),
            const(kp["w1"].shape), const(kp["b1"].shape),
            const(kp["w2"].shape), const(kp["b2"].shape),
            const(kp["w3"].shape), const(kp["b3"].shape),
        ],
        out_specs=pl.BlockSpec((tile_b, a_p), lambda i: (i, 0)),
        compiler_params=pltpu.CompilerParams(
            dimension_semantics=("parallel",),  # lets v7x split batch tiles over 2 TCs
        ),
    )(x_bf16, kp["w1"], kp["b1"], kp["w2"], kp["b2"], kp["w3"], kp["b3"])

    # Slice off padded rows/action lanes inside the same jit (no extra round trip).
    return out[:B, :n_action].astype(jnp.float32)


def qnet_reference(x, p):
    h1 = jnp.maximum(x @ p["w1"] + p["b1"], 0.0)
    h2 = jnp.maximum(h1 @ p["w2"] + p["b2"], 0.0)
    return h2 @ p["w3"] + p["b3"]


if __name__ == "__main__":
    dim_state, n_hidden, n_action = 16, 32, 6

    key = jax.random.PRNGKey(0)
    kx, kparams_key, kx2, kx3 = jax.random.split(key, 4)
    params = init_qnet_params(kparams_key, dim_state, n_hidden, n_action)
    kparams = prepare_params(params)

    # Small batch: single grid step, batch padded to a multiple of 16 (bf16 packing).
    x = jax.random.normal(kx, (8, dim_state), jnp.float32)
    out = jax.block_until_ready(qnet_forward(x, kparams, n_action=n_action))
    ref = qnet_reference(x, params)
    assert out.shape == (8, n_action)
    # bf16 operands with f32 accumulation -> loose tolerance vs the f32 reference.
    assert jnp.allclose(out, ref, atol=5e-2, rtol=5e-2), "mismatch (small batch)"

    # Medium batch: padded to 256, two 128-row tiles (>= 2 steps for v7x).
    x2 = jax.random.normal(kx2, (200, dim_state), jnp.float32)
    out2 = jax.block_until_ready(qnet_forward(x2, kparams, n_action=n_action))
    ref2 = qnet_reference(x2, params)
    assert out2.shape == (200, n_action)
    assert jnp.allclose(out2, ref2, atol=5e-2, rtol=5e-2), "mismatch (medium batch)"

    # Large batch: exercises the 1024-row tile path (grid of 2 x 1024 rows).
    x3 = jax.random.normal(kx3, (2048, dim_state), jnp.float32)
    out3 = jax.block_until_ready(qnet_forward(x3, kparams, n_action=n_action))
    ref3 = qnet_reference(x3, params)
    assert out3.shape == (2048, n_action)
    assert jnp.allclose(out3, ref3, atol=5e-2, rtol=5e-2), "mismatch (large batch)"

    print("KERNEL_OK")
</pallas_src>

<mosaic_0001>
module attributes {stable_mosaic.version = 11 : i64} {
  func.func @qnet_kernel(%arg0: i32, %arg1: memref<16x16xbf16, #tpu.memory_space<vmem>>, %arg2: memref<16x128xbf16, #tpu.memory_space<vmem>>, %arg3: memref<1x128xf32, #tpu.memory_space<vmem>>, %arg4: memref<128x128xbf16, #tpu.memory_space<vmem>>, %arg5: memref<1x128xf32, #tpu.memory_space<vmem>>, %arg6: memref<128x128xbf16, #tpu.memory_space<vmem>>, %arg7: memref<1x128xf32, #tpu.memory_space<vmem>>, %arg8: memref<16x128xf32, #tpu.memory_space<vmem>>) attributes {dimension_semantics = [#tpu.dimension_semantics<parallel>], iteration_bounds = array<i64: 1>, scalar_prefetch = 0 : i64, scratch_operands = 0 : i64, tpu.core_type = #tpu.core_type<tc>, window_params = [{transform_indices = @transform_0, window_bounds = array<i64: 16, 16>}, {pipeline_mode = #tpu.pipeline_mode<synchronous>, transform_indices = @transform_1, window_bounds = array<i64: 16, 128>}, {pipeline_mode = #tpu.pipeline_mode<synchronous>, transform_indices = @transform_2, window_bounds = array<i64: 1, 128>}, {pipeline_mode = #tpu.pipeline_mode<synchronous>, transform_indices = @transform_3, window_bounds = array<i64: 128, 128>}, {pipeline_mode = #tpu.pipeline_mode<synchronous>, transform_indices = @transform_4, window_bounds = array<i64: 1, 128>}, {pipeline_mode = #tpu.pipeline_mode<synchronous>, transform_indices = @transform_5, window_bounds = array<i64: 128, 128>}, {pipeline_mode = #tpu.pipeline_mode<synchronous>, transform_indices = @transform_6, window_bounds = array<i64: 1, 128>}, {transform_indices = @transform_7, window_bounds = array<i64: 16, 128>}]} {
    %c0 = arith.constant 0 : index
    %c0_0 = arith.constant 0 : index
    %0 = vector.load %arg1[%c0, %c0_0] : memref<16x16xbf16, #tpu.memory_space<vmem>>, vector<16x16xbf16>
    %c0_1 = arith.constant 0 : index
    %c0_2 = arith.constant 0 : index
    %1 = vector.load %arg2[%c0_1, %c0_2] : memref<16x128xbf16, #tpu.memory_space<vmem>>, vector<16x128xbf16>
    %cst = arith.constant dense<0.000000e+00> : vector<16x128xf32>
    %2 = tpu.matmul %0, %1, %cst {dimension_numbers = #tpu.dot_dimension_numbers<[1], [0], [0], [1], [0, 0, 1, 1], [], []>} : vector<16x16xbf16>, vector<16x128xbf16>, vector<16x128xf32> -> vector<16x128xf32>
    %c0_3 = arith.constant 0 : index
    %c0_4 = arith.constant 0 : index
    %3 = vector.load %arg3[%c0_3, %c0_4] : memref<1x128xf32, #tpu.memory_space<vmem>>, vector<1x128xf32>
    %4 = vector.broadcast %3 : vector<1x128xf32> to vector<16x128xf32>
    %5 = arith.addf %2, %4 : vector<16x128xf32>
    %cst_5 = arith.constant 0.000000e+00 : f32
    %6 = vector.broadcast %cst_5 : f32 to vector<16x128xf32>
    %7 = arith.maximumf %5, %6 : vector<16x128xf32>
    %8 = arith.truncf %7 : vector<16x128xf32> to vector<16x128xbf16>
    %c0_6 = arith.constant 0 : index
    %c0_7 = arith.constant 0 : index
    %9 = vector.load %arg4[%c0_6, %c0_7] : memref<128x128xbf16, #tpu.memory_space<vmem>>, vector<128x128xbf16>
    %cst_8 = arith.constant dense<0.000000e+00> : vector<16x128xf32>
    %10 = tpu.matmul %8, %9, %cst_8 {dimension_numbers = #tpu.dot_dimension_numbers<[1], [0], [0], [1], [0, 0, 1, 1], [], []>} : vector<16x128xbf16>, vector<128x128xbf16>, vector<16x128xf32> -> vector<16x128xf32>
    %c0_9 = arith.constant 0 : index
    %c0_10 = arith.constant 0 : index
    %11 = vector.load %arg5[%c0_9, %c0_10] : memref<1x128xf32, #tpu.memory_space<vmem>>, vector<1x128xf32>
    %12 = vector.broadcast %11 : vector<1x128xf32> to vector<16x128xf32>
    %13 = arith.addf %10, %12 : vector<16x128xf32>
    %cst_11 = arith.constant 0.000000e+00 : f32
    %14 = vector.broadcast %cst_11 : f32 to vector<16x128xf32>
    %15 = arith.maximumf %13, %14 : vector<16x128xf32>
    %16 = arith.truncf %15 : vector<16x128xf32> to vector<16x128xbf16>
    %c0_12 = arith.constant 0 : index
    %c0_13 = arith.constant 0 : index
    %17 = vector.load %arg6[%c0_12, %c0_13] : memref<128x128xbf16, #tpu.memory_space<vmem>>, vector<128x128xbf16>
    %cst_14 = arith.constant dense<0.000000e+00> : vector<16x128xf32>
    %18 = tpu.matmul %16, %17, %cst_14 {dimension_numbers = #tpu.dot_dimension_numbers<[1], [0], [0], [1], [0, 0, 1, 1], [], []>} : vector<16x128xbf16>, vector<128x128xbf16>, vector<16x128xf32> -> vector<16x128xf32>
    %c0_15 = arith.constant 0 : index
    %c0_16 = arith.constant 0 : index
    %19 = vector.load %arg7[%c0_15, %c0_16] : memref<1x128xf32, #tpu.memory_space<vmem>>, vector<1x128xf32>
    %20 = vector.broadcast %19 : vector<1x128xf32> to vector<16x128xf32>
    %21 = arith.addf %18, %20 : vector<16x128xf32>
    %c0_17 = arith.constant 0 : index
    %c0_18 = arith.constant 0 : index
    %22 = vector.load %arg8[%c0_17, %c0_18] : memref<16x128xf32, #tpu.memory_space<vmem>>, vector<16x128xf32>
    tpu.vector_store %arg8[%c0_17, %c0_18], %21 {strides = array<i32>} : memref<16x128xf32, #tpu.memory_space<vmem>>, vector<16x128xf32>,
    return
  }
  func.func @transform_0(%arg0: i32) -> (i32, i32) {
    %c0_i32 = arith.constant 0 : i32
    %c0_i32_0 = arith.constant 0 : i32
    return %arg0, %c0_i32 : i32, i32
  }
  func.func @transform_1(%arg0: i32) -> (i32, i32) {
    %c0_i32 = arith.constant 0 : i32
    %c0_i32_0 = arith.constant 0 : i32
    %c0_i32_1 = arith.constant 0 : i32
    return %c0_i32, %c0_i32_0 : i32, i32
  }
  func.func @transform_2(%arg0: i32) -> (i32, i32) {
    %c0_i32 = arith.constant 0 : i32
    %c0_i32_0 = arith.constant 0 : i32
    %c0_i32_1 = arith.constant 0 : i32
    return %c0_i32, %c0_i32_0 : i32, i32
  }
  func.func @transform_3(%arg0: i32) -> (i32, i32) {
    %c0_i32 = arith.constant 0 : i32
    %c0_i32_0 = arith.constant 0 : i32
    %c0_i32_1 = arith.constant 0 : i32
    return %c0_i32, %c0_i32_0 : i32, i32
  }
  func.func @transform_4(%arg0: i32) -> (i32, i32) {
    %c0_i32 = arith.constant 0 : i32
    %c0_i32_0 = arith.constant 0 : i32
    %c0_i32_1 = arith.constant 0 : i32
    return %c0_i32, %c0_i32_0 : i32, i32
  }
  func.func @transform_5(%arg0: i32) -> (i32, i32) {
    %c0_i32 = arith.constant 0 : i32
    %c0_i32_0 = arith.constant 0 : i32
    %c0_i32_1 = arith.constant 0 : i32
    return %c0_i32, %c0_i32_0 : i32, i32
  }
  func.func @transform_6(%arg0: i32) -> (i32, i32) {
    %c0_i32 = arith.constant 0 : i32
    %c0_i32_0 = arith.constant 0 : i32
    %c0_i32_1 = arith.constant 0 : i32
    return %c0_i32, %c0_i32_0 : i32, i32
  }
  func.func @transform_7(%arg0: i32) -> (i32, i32) {
    %c0_i32 = arith.constant 0 : i32
    %c0_i32_0 = arith.constant 0 : i32
    return %arg0, %c0_i32 : i32, i32
  }
}

</mosaic_0001>

<llo_original>
// kernel: qnet_forward.1
$region0: #{qnet_forward.1}
  #allocation0 [shape = 'u32[]', space=smem, size = 0x4, offset = 0x4, fixed_abs, tag = 'smem constant byte address 0x4 - core index']
  #allocation1 [shape = 'u32[144,128]{1,0:T(1,128)}', space=vmem, size = 0x12000, scoped, tag = 'internal scratch']
  %s0 = inlined_call_operand.vmem [shape: bf16[16,16], index: 0, kind: input, shape index: {}]
  %s1 = inlined_call_operand.vmem [shape: bf16[16,128], index: 1, kind: input, shape index: {}]
  %s2 = inlined_call_operand.vmem [shape: f32[1,128], index: 2, kind: input, shape index: {}]
  %s3 = inlined_call_operand.hbm [shape: bf16[128,128], index: 3, kind: input, shape index: {}]
  %s4 = inlined_call_operand.vmem [shape: f32[1,128], index: 4, kind: input, shape index: {}]
  %s5 = inlined_call_operand.hbm [shape: bf16[128,128], index: 5, kind: input, shape index: {}]
  %s6 = inlined_call_operand.vmem [shape: f32[1,128], index: 6, kind: input, shape index: {}]
  %s7 = inlined_call_operand.vmem [shape: f32[16,128], index: 7, kind: output, shape index: {}]
  %s8 = sld [smem:[#allocation0]]
  $region46: #{qnet_forward.1} parent=0
    _
  %s10 = ssub.s32 1, %s8
  %s11 = scalar_select 0, %s10, %s8
  $region1: #{qnet_forward.1} parent=0
    #allocation2 [shape = 'u8[32768]{0}', space=vmem, size = 0x8000, scoped, tag = 'input window, operand 3, single buffered']
    #allocation3 [shape = 's32[1]{0}', space=sflag, size = 0x4, scoped, tag = 'scoped memory for qnet_forward.1']
    #allocation4 [shape = 'u8[32768]{0}', space=vmem, size = 0x8000, scoped, tag = 'input window, operand 5, single buffered']
    #allocation5 [shape = 's32[1]{0}', space=sflag, size = 0x4, scoped, tag = 'scoped memory for qnet_forward.1']
    %12 = vsyncpa [#allocation3], 0
    %13 = vsyncpa [#allocation5], 0
    // Predicated region
    $region2: #{qnet_forward.1} parent=1 // pred_check
      _
    $region3: #{qnet_forward.1} parent=1 // pred_check_branch
      %15 = sbr.rel (0) target = $region5
    $region4: #{qnet_forward.1} parent=1 // pred_region
      _
    $region5: #{qnet_forward.1} parent=1 // pred_fallthru
      _
    // Predicated region
    $region6: #{qnet_forward.1} parent=1 // pred_check
      _
    $region7: #{qnet_forward.1} parent=1 // pred_check_branch
      %17 = sbr.rel (0) target = $region9
    $region8: #{qnet_forward.1} parent=1 // pred_region
      _
    $region9: #{qnet_forward.1} parent=1 // pred_fallthru
      _
    // Predicated region
    $region10: #{qnet_forward.1} parent=1 // pred_check
      _
    $region11: #{qnet_forward.1} parent=1 // pred_check_branch
      %19 = sbr.rel (0) target = $region13
    $region12: #{qnet_forward.1} parent=1 // pred_region
      _
    $region13: #{qnet_forward.1} parent=1 // pred_fallthru
      _
    // Predicated region
    $region14: #{qnet_forward.1} parent=1 // pred_check
      _
    $region15: #{qnet_forward.1} parent=1 // pred_check_branch
      %21 = sbr.rel (0) target = $region17
    $region16: #{qnet_forward.1} parent=1 // pred_region
      %s23 = ssub.s32 1024, 1024
      %24 = vsyncadd [#allocation3], %s23
      %s25 = sshll.u32 [#allocation2], 4
      %s26 = int_to_ptr.vmem [resolvable:$true] %s25
      %31 = dma.hbm_to_vmem [thread:$0]  %s3, 1024, %s26, [#allocation3], 64, 64, 4
    $region17: #{qnet_forward.1} parent=1 // pred_fallthru
      _
    // Predicated region
    $region18: #{qnet_forward.1} parent=1 // pred_check
      _
    $region19: #{qnet_forward.1} parent=1 // pred_check_branch
      %33 = sbr.rel (0) target = $region21
    $region20: #{qnet_forward.1} parent=1 // pred_region
      _
    $region21: #{qnet_forward.1} parent=1 // pred_fallthru
      _
    // Predicated region
    $region22: #{qnet_forward.1} parent=1 // pred_check
      _
    $region23: #{qnet_forward.1} parent=1 // pred_check_branch
      %35 = sbr.rel (0) target = $region25
    $region24: #{qnet_forward.1} parent=1 // pred_region
      %s37 = ssub.s32 1024, 1024
      %38 = vsyncadd [#allocation5], %s37
      %s39 = sshll.u32 [#allocation4], 4
      %s40 = int_to_ptr.vmem [resolvable:$true] %s39
      %45 = dma.hbm_to_vmem [thread:$0]  %s5, 1024, %s40, [#allocation5], 64, 64, 4
    $region25: #{qnet_forward.1} parent=1 // pred_fallthru
      _
    // Predicated region
    $region26: #{qnet_forward.1} parent=1 // pred_check
      _
    $region27: #{qnet_forward.1} parent=1 // pred_check_branch
      %47 = sbr.rel (0) target = $region29
    $region28: #{qnet_forward.1} parent=1 // pred_region
      _
    $region29: #{qnet_forward.1} parent=1 // pred_fallthru
      _
    // Predicated region
    $region30: #{qnet_forward.1} parent=1 // pred_check
      _
    $region31: #{qnet_forward.1} parent=1 // pred_check_branch
      %49 = sbr.rel (0) target = $region33
    $region32: #{qnet_forward.1} parent=1 // pred_region
      %50 = dma.done [#allocation3], 1024
    $region33: #{qnet_forward.1} parent=1 // pred_fallthru
      _
    // Predicated region
    $region34: #{qnet_forward.1} parent=1 // pred_check
      _
    $region35: #{qnet_forward.1} parent=1 // pred_check_branch
      %52 = sbr.rel (0) target = $region37
    $region36: #{qnet_forward.1} parent=1 // pred_region
      %53 = dma.done [#allocation5], 1024
    $region37: #{qnet_forward.1} parent=1 // pred_fallthru
      _
    %v55 = vld [vmem:[%s0] sm:$0xf]
    %v56 = vld [vmem:[%s0 + $0x4] sm:$0xf]
    %v57 = vld [vmem:[%s1] sm:$0xf]
    %v58 = vld [vmem:[%s1 + $0x4] sm:$0xf]
    %v59 = vld [vmem:[%s2] sm:$0x1]
    %v61 = vlaneseq
    %v62 = vshrl.u32 %v61, 7
    %v63 = vsub.s32 0, %v62
    %v64 = vrot.slane %v59, %v63
    %v68 = vunpack.c.l.b16 %v55
    %v69 = vunpack.c.l.b16 %v56
    %v70 = vpack.c.b16 %v69, %v68
    %v73 = vunpack.c.l.b16 %v57
    %v74 = vunpack.c.l.b16 %v58
    %v75 = vpack.c.b16 %v74, %v73
    %vm77 = vcmask 130048
    %v79 = vsel %vm77, %v70, 0
    %81 = vmatprep.subr.bf16.mxu0 0
    %82 = vmatpush1.bf16.msra.mxu0 %v75
    %83 = vmatprep.subr.bf16.mxu0 0
    %84 = vmatpush1.bf16.msra.mxu0 0
    %85 = vmatprep.subr.bf16.mxu0 0
    %86 = vmatpush1.bf16.msra.mxu0 0
    %87 = vmatprep.subr.bf16.mxu0 0
    %88 = vmatpush1.bf16.msra.mxu0 0
    %89 = vmatprep.subr.bf16.mxu0 0
    %90 = vmatpush1.bf16.msra.mxu0 0
    %91 = vmatprep.subr.bf16.mxu0 0
    %92 = vmatpush1.bf16.msra.mxu0 0
    %93 = vmatprep.subr.bf16.mxu0 0
    %94 = vmatpush1.bf16.msra.mxu0 0
    %95 = vmatprep.subr.bf16.mxu0 0
    %96 = vmatpush1.bf16.msra.mxu0 0
    %97 = vmatprep.subr.bf16.mxu0 0
    %98 = vmatpush1.bf16.msra.mxu0 0
    %99 = vmatprep.subr.bf16.mxu0 0
    %100 = vmatpush1.bf16.msra.mxu0 0
    %101 = vmatprep.subr.bf16.mxu0 0
    %102 = vmatpush1.bf16.msra.mxu0 0
    %103 = vmatprep.subr.bf16.mxu0 0
    %104 = vmatpush1.bf16.msra.mxu0 0
    %105 = vmatprep.subr.bf16.mxu0 0
    %106 = vmatpush1.bf16.msra.mxu0 0
    %107 = vmatprep.subr.bf16.mxu0 0
    %108 = vmatpush1.bf16.msra.mxu0 0
    %109 = vmatprep.subr.bf16.mxu0 0
    %110 = vmatpush1.bf16.msra.mxu0 0
    %111 = vmatprep.subr.bf16.mxu0 0
    %112 = vmatpush1.bf16.msra.mxu0 0
    %113 = vmatprep.mubr.bf16.mxu0 0
    %114 = vmatmul.mubr.bf16.gmra.mrb[0].mxu0 %v79
    %v115 = vpop.f32.mrb[0].mxu0
    %v116 = vadd.f32 %v64, %v115
    %v117 = vpop.f32.mrb[0].mxu0
    %v118 = vpop.f32.mrb[0].mxu0
    %v119 = vadd.f32 %v64, %v118
    %v120 = vpop.f32.mrb[0].mxu0
    %121 = vdwg.mxu0
    %v122 = vmax.f32 %v116, 0.0
    %v123 = vmax.f32 %v119, 0.0
    %v124 = vpack.c.bf16 %v123, %v122
    %v125 = vld [vmem:[#allocation2] sm:$0xf]
    %v126 = vld [vmem:[#allocation2 + $0x4] sm:$0xf]
    %v127 = vld [vmem:[#allocation2 + $0x8] sm:$0xf]
    %v128 = vld [vmem:[#allocation2 + $0xc] sm:$0xf]
    %v129 = vld [vmem:[#allocation2 + $0x10] sm:$0xf]
    %v130 = vld [vmem:[#allocation2 + $0x14] sm:$0xf]
    %v131 = vld [vmem:[#allocation2 + $0x18] sm:$0xf]
    %v132 = vld [vmem:[#allocation2 + $0x1c] sm:$0xf]
    %v133 = vld [vmem:[#allocation2 + $0x20] sm:$0xf]
    %v134 = vld [vmem:[#allocation2 + $0x24] sm:$0xf]
    %v135 = vld [vmem:[#allocation2 + $0x28] sm:$0xf]
    %v136 = vld [vmem:[#allocation2 + $0x2c] sm:$0xf]
    %v137 = vld [vmem:[#allocation2 + $0x30] sm:$0xf]
    %v138 = vld [vmem:[#allocation2 + $0x34] sm:$0xf]
    %v139 = vld [vmem:[#allocation2 + $0x38] sm:$0xf]
    %v140 = vld [vmem:[#allocation2 + $0x3c] sm:$0xf]
    %v141 = vld [vmem:[%s4] sm:$0x1]
    %v143 = vlaneseq
    %v144 = vshrl.u32 %v143, 7
    %v145 = vsub.s32 0, %v144
    %v146 = vrot.slane %v141, %v145
    %v164 = vunpack.c.l.b16 %v125
    %v165 = vunpack.c.l.b16 %v126
    %v166 = vunpack.c.l.b16 %v127
    %v167 = vunpack.c.l.b16 %v128
    %v168 = vunpack.c.l.b16 %v129
    %v169 = vunpack.c.l.b16 %v130
    %v170 = vunpack.c.l.b16 %v131
    %v171 = vunpack.c.l.b16 %v132
    %v172 = vunpack.c.l.b16 %v133
    %v173 = vunpack.c.l.b16 %v134
    %v174 = vunpack.c.l.b16 %v135
    %v175 = vunpack.c.l.b16 %v136
    %v176 = vunpack.c.l.b16 %v137
    %v177 = vunpack.c.l.b16 %v138
    %v178 = vunpack.c.l.b16 %v139
    %v179 = vunpack.c.l.b16 %v140
    %v180 = vpack.c.b16 %v165, %v164
    %v181 = vpack.c.b16 %v167, %v166
    %v182 = vpack.c.b16 %v169, %v168
    %v183 = vpack.c.b16 %v171, %v170
    %v184 = vpack.c.b16 %v173, %v172
    %v185 = vpack.c.b16 %v175, %v174
    %v186 = vpack.c.b16 %v177, %v176
    %v187 = vpack.c.b16 %v179, %v178
    %196 = vmatprep.subr.bf16.mxu0 0
    %197 = vmatpush1.bf16.msra.mxu0 %v180
    %198 = vmatprep.subr.bf16.mxu0 0
    %199 = vmatpush1.bf16.msra.mxu0 %v181
    %200 = vmatprep.subr.bf16.mxu0 0
    %201 = vmatpush1.bf16.msra.mxu0 %v182
    %202 = vmatprep.subr.bf16.mxu0 0
    %203 = vmatpush1.bf16.msra.mxu0 %v183
    %204 = vmatprep.subr.bf16.mxu0 0
    %205 = vmatpush1.bf16.msra.mxu0 %v184
    %206 = vmatprep.subr.bf16.mxu0 0
    %207 = vmatpush1.bf16.msra.mxu0 %v185
    %208 = vmatprep.subr.bf16.mxu0 0
    %209 = vmatpush1.bf16.msra.mxu0 %v186
    %210 = vmatprep.subr.bf16.mxu0 0
    %211 = vmatpush1.bf16.msra.mxu0 %v187
    %212 = vmatprep.subr.bf16.mxu0 0
    %213 = vmatpush1.bf16.msra.mxu0 0
    %214 = vmatprep.subr.bf16.mxu0 0
    %215 = vmatpush1.bf16.msra.mxu0 0
    %216 = vmatprep.subr.bf16.mxu0 0
    %217 = vmatpush1.bf16.msra.mxu0 0
    %218 = vmatprep.subr.bf16.mxu0 0
    %219 = vmatpush1.bf16.msra.mxu0 0
    %220 = vmatprep.subr.bf16.mxu0 0
    %221 = vmatpush1.bf16.msra.mxu0 0
    %222 = vmatprep.subr.bf16.mxu0 0
    %223 = vmatpush1.bf16.msra.mxu0 0
    %224 = vmatprep.subr.bf16.mxu0 0
    %225 = vmatpush1.bf16.msra.mxu0 0
    %226 = vmatprep.subr.bf16.mxu0 0
    %227 = vmatpush1.bf16.msra.mxu0 0
    %228 = vmatprep.mubr.bf16.mxu0 0
    %229 = vmatmul.mubr.bf16.gmra.mrb[0].mxu0 %v124
    %v230 = vpop.f32.mrb[0].mxu0
    %v231 = vadd.f32 %v146, %v230
    %v232 = vpop.f32.mrb[0].mxu0
    %v233 = vpop.f32.mrb[0].mxu0
    %v234 = vadd.f32 %v146, %v233
    %v235 = vpop.f32.mrb[0].mxu0
    %236 = vdwg.mxu0
    %v237 = vmax.f32 %v231, 0.0
    %v238 = vmax.f32 %v234, 0.0
    %v239 = vpack.c.bf16 %v238, %v237
    %v240 = vld [vmem:[#allocation4] sm:$0xf]
    %v241 = vld [vmem:[#allocation4 + $0x4] sm:$0xf]
    %v242 = vld [vmem:[#allocation4 + $0x8] sm:$0xf]
    %v243 = vld [vmem:[#allocation4 + $0xc] sm:$0xf]
    %v244 = vld [vmem:[#allocation4 + $0x10] sm:$0xf]
    %v245 = vld [vmem:[#allocation4 + $0x14] sm:$0xf]
    %v246 = vld [vmem:[#allocation4 + $0x18] sm:$0xf]
    %v247 = vld [vmem:[#allocation4 + $0x1c] sm:$0xf]
    %v248 = vld [vmem:[#allocation4 + $0x20] sm:$0xf]
    %v249 = vld [vmem:[#allocation4 + $0x24] sm:$0xf]
    %v250 = vld [vmem:[#allocation4 + $0x28] sm:$0xf]
    %v251 = vld [vmem:[#allocation4 + $0x2c] sm:$0xf]
    %v252 = vld [vmem:[#allocation4 + $0x30] sm:$0xf]
    %v253 = vld [vmem:[#allocation4 + $0x34] sm:$0xf]
    %v254 = vld [vmem:[#allocation4 + $0x38] sm:$0xf]
    %v255 = vld [vmem:[#allocation4 + $0x3c] sm:$0xf]
    %v256 = vld [vmem:[%s6] sm:$0x1]
    %v258 = vlaneseq
    %v259 = vshrl.u32 %v258, 7
    %v260 = vsub.s32 0, %v259
    %v261 = vrot.slane %v256, %v260
    %v279 = vunpack.c.l.b16 %v240
    %v280 = vunpack.c.l.b16 %v241
    %v281 = vunpack.c.l.b16 %v242
    %v282 = vunpack.c.l.b16 %v243
    %v283 = vunpack.c.l.b16 %v244
    %v284 = vunpack.c.l.b16 %v245
    %v285 = vunpack.c.l.b16 %v246
    %v286 = vunpack.c.l.b16 %v247
    %v287 = vunpack.c.l.b16 %v248
    %v288 = vunpack.c.l.b16 %v249
    %v289 = vunpack.c.l.b16 %v250
    %v290 = vunpack.c.l.b16 %v251
    %v291 = vunpack.c.l.b16 %v252
    %v292 = vunpack.c.l.b16 %v253
    %v293 = vunpack.c.l.b16 %v254
    %v294 = vunpack.c.l.b16 %v255
    %v295 = vpack.c.b16 %v280, %v279
    %v296 = vpack.c.b16 %v282, %v281
    %v297 = vpack.c.b16 %v284, %v283
    %v298 = vpack.c.b16 %v286, %v285
    %v299 = vpack.c.b16 %v288, %v287
    %v300 = vpack.c.b16 %v290, %v289
    %v301 = vpack.c.b16 %v292, %v291
    %v302 = vpack.c.b16 %v294, %v293
    %311 = vmatprep.subr.bf16.mxu0 0
    %312 = vmatpush1.bf16.msra.mxu0 %v295
    %313 = vmatprep.subr.bf16.mxu0 0
    %314 = vmatpush1.bf16.msra.mxu0 %v296
    %315 = vmatprep.subr.bf16.mxu0 0
    %316 = vmatpush1.bf16.msra.mxu0 %v297
    %317 = vmatprep.subr.bf16.mxu0 0
    %318 = vmatpush1.bf16.msra.mxu0 %v298
    %319 = vmatprep.subr.bf16.mxu0 0
    %320 = vmatpush1.bf16.msra.mxu0 %v299
    %321 = vmatprep.subr.bf16.mxu0 0
    %322 = vmatpush1.bf16.msra.mxu0 %v300
    %323 = vmatprep.subr.bf16.mxu0 0
    %324 = vmatpush1.bf16.msra.mxu0 %v301
    %325 = vmatprep.subr.bf16.mxu0 0
    %326 = vmatpush1.bf16.msra.mxu0 %v302
    %327 = vmatprep.subr.bf16.mxu0 0
    %328 = vmatpush1.bf16.msra.mxu0 0
    %329 = vmatprep.subr.bf16.mxu0 0
    %330 = vmatpush1.bf16.msra.mxu0 0
    %331 = vmatprep.subr.bf16.mxu0 0
    %332 = vmatpush1.bf16.msra.mxu0 0
    %333 = vmatprep.subr.bf16.mxu0 0
    %334 = vmatpush1.bf16.msra.mxu0 0
    %335 = vmatprep.subr.bf16.mxu0 0
    %336 = vmatpush1.bf16.msra.mxu0 0
    %337 = vmatprep.subr.bf16.mxu0 0
    %338 = vmatpush1.bf16.msra.mxu0 0
    %339 = vmatprep.subr.bf16.mxu0 0
    %340 = vmatpush1.bf16.msra.mxu0 0
    %341 = vmatprep.subr.bf16.mxu0 0
    %342 = vmatpush1.bf16.msra.mxu0 0
    %343 = vmatprep.mubr.bf16.mxu0 0
    %344 = vmatmul.mubr.bf16.gmra.mrb[0].mxu0 %v239
    %v345 = vpop.f32.mrb[0].mxu0
    %v346 = vadd.f32 %v261, %v345
    %v347 = vpop.f32.mrb[0].mxu0
    %v348 = vpop.f32.mrb[0].mxu0
    %v349 = vadd.f32 %v261, %v348
    %v350 = vpop.f32.mrb[0].mxu0
    %351 = vdwg.mxu0
    %352 = vst [vmem:[%s7] sm:$0xff] %v346
    %353 = vst [vmem:[%s7 + $0x8] sm:$0xff] %v349
    // Predicated region
    $region38: #{qnet_forward.1} parent=1 // pred_check
      _
    $region39: #{qnet_forward.1} parent=1 // pred_check_branch
      %355 = sbr.rel (0) target = $region41
    $region40: #{qnet_forward.1} parent=1 // pred_region
      _
    $region41: #{qnet_forward.1} parent=1 // pred_fallthru
      _
    // Predicated region
    $region42: #{qnet_forward.1} parent=1 // pred_check
      _
    $region43: #{qnet_forward.1} parent=1 // pred_check_branch
      %357 = sbr.rel (0) target = $region45
    $region44: #{qnet_forward.1} parent=1 // pred_region
      _
    $region45: #{qnet_forward.1} parent=1 // pred_fallthru
      _
    %358 = vsyncpa [#allocation3], 1
    %359 = vsyncpa [#allocation5], 1

</llo_original>
